<compile_context>
chip_gen: v7x
topology: tpu7x:2x2x1
jax: 0.10.0
libtpu: 0.0.40
codegen_flags: <defaults>
</compile_context>

<pallas_src>
import functools

import jax
import jax.numpy as jnp
from jax.experimental import pallas as pl
from jax.experimental.pallas import tpu as pltpu


def _linear_kernel(x_ref, w_ref, b_ref, o_ref, acc_ref):
    """One (i, j, k) grid step: acc[i,j] += x[i,k] @ w[k,j]; add bias at the end."""
    k = pl.program_id(2)

    @pl.when(k == 0)
    def _():
        acc_ref[...] = jnp.zeros_like(acc_ref)

    acc_ref[...] += jnp.dot(
        x_ref[...], w_ref[...], preferred_element_type=jnp.float32
    )

    @pl.when(k == pl.num_programs(2) - 1)
    def _():
        # b_ref is (1, bn) and broadcasts over the (bm, bn) accumulator.
        o_ref[...] = (acc_ref[...] + b_ref[...].astype(jnp.float32)).astype(
            o_ref.dtype
        )


@functools.partial(jax.jit, static_argnames=("tm", "tn", "tk"))
def linear_pallas(x, w, b=None, *, tm=256, tn=256, tk=512):
    """Y = X @ W + b via a tiled Pallas TPU matmul kernel.

    x: (M, K), w: (K, N), b: (N,) or None.
    """
    M, K = x.shape
    Kw, N = w.shape
    assert K == Kw, "inner dimensions must match"
    out_dtype = x.dtype

    if b is None:
        # TODO(synk): could emit a bias-free kernel variant instead of adding zeros.
        b = jnp.zeros((N,), dtype=out_dtype)

    # --- block-size selection --------------------------------------------
    # Sublane dims (M of x/out): full dim if small, else a multiple of 8.
    bm = M if M <= tm else tm
    # Lane dims (N of w/out, K of x): full dim if small, else a multiple of 128.
    bn = N if N <= tn else tn
    if K <= tk:
        bk = K  # single reduction step, no padding needed
    else:
        bk = tk
        Kp = pl.cdiv(K, bk) * bk
        if Kp != K:
            # Pad only the reduction axis: overhang garbage there would corrupt
            # valid outputs (M/N overhangs are clipped by Pallas instead).
            x = jnp.pad(x, ((0, 0), (0, Kp - K)))
            w = jnp.pad(w, ((0, Kp - K), (0, 0)))
        K = Kp

    b2d = b.reshape(1, N)

    grid = (pl.cdiv(M, bm), pl.cdiv(N, bn), K // bk)

    out = pl.pallas_call(
        _linear_kernel,
        out_shape=jax.ShapeDtypeStruct((M, N), out_dtype),
        grid_spec=pltpu.PrefetchScalarGridSpec(
            num_scalar_prefetch=0,
            grid=grid,
            in_specs=[
                pl.BlockSpec((bm, bk), lambda i, j, k: (i, k)),  # X tile
                pl.BlockSpec((bk, bn), lambda i, j, k: (k, j)),  # W tile
                pl.BlockSpec((1, bn), lambda i, j, k: (0, j)),   # bias slab
            ],
            out_specs=pl.BlockSpec((bm, bn), lambda i, j, k: (i, j)),
            scratch_shapes=[pltpu.VMEM((bm, bn), jnp.float32)],
        ),
        compiler_params=pltpu.CompilerParams(
            dimension_semantics=("parallel", "parallel", "arbitrary"),
        ),
    )(x, w, b2d)
    return out


if __name__ == "__main__":
    key = jax.random.PRNGKey(0)
    kx, kw, kb = jax.random.split(key, 3)

    # Small shapes consistent with the module: rows = data, cols = features.
    batch, input_dim, output_dim = 8, 32, 32
    x = jax.random.normal(kx, (batch, input_dim), dtype=jnp.float32)
    # initOption='Normal': w ~ N(0,1), b ~ N(0,1) (matches w.normal_()/b.normal_()).
    w = jax.random.normal(kw, (input_dim, output_dim), dtype=jnp.float32)
    b = jax.random.normal(kb, (output_dim,), dtype=jnp.float32)

    out = linear_pallas(x, w, b)
    out = jax.block_until_ready(out)

    # Reference: Y = X @ W + b (same semantics as the PyTorch forward).
    ref = x @ w + b
    assert out.shape == ref.shape and out.dtype == ref.dtype
    assert jnp.allclose(out, ref, rtol=1e-5, atol=1e-5), "mismatch vs reference Linear"

    print("KERNEL_OK")
</pallas_src>

<mosaic_0001>
module attributes {stable_mosaic.version = 11 : i64} {
  func.func @_linear_kernel(%arg0: i32, %arg1: i32, %arg2: i32, %arg3: memref<8x32xf32, #tpu.memory_space<vmem>>, %arg4: memref<32x32xf32, #tpu.memory_space<vmem>>, %arg5: memref<1x32xf32, #tpu.memory_space<vmem>>, %arg6: memref<8x32xf32, #tpu.memory_space<vmem>>, %arg7: memref<8x32xf32, #tpu.memory_space<vmem>>) attributes {dimension_semantics = [#tpu.dimension_semantics<parallel>, #tpu.dimension_semantics<parallel>, #tpu.dimension_semantics<arbitrary>], iteration_bounds = array<i64: 1, 1, 1>, scalar_prefetch = 0 : i64, scratch_operands = 1 : i64, tpu.core_type = #tpu.core_type<tc>, window_params = [{transform_indices = @transform_0, window_bounds = array<i64: 8, 32>}, {transform_indices = @transform_1, window_bounds = array<i64: 32, 32>}, {transform_indices = @transform_2, window_bounds = array<i64: 1, 32>}, {transform_indices = @transform_3, window_bounds = array<i64: 8, 32>}]} {
    %c0_i32 = arith.constant 0 : i32
    %0 = arith.cmpi eq, %arg2, %c0_i32 : i32
    %1 = arith.extui %0 : i1 to i32
    %c0_i32_0 = arith.constant 0 : i32
    %2 = arith.cmpi ne, %1, %c0_i32_0 : i32
    scf.if %2 {
      %cst_10 = arith.constant 0.000000e+00 : f32
      %12 = vector.broadcast %cst_10 : f32 to vector<8x32xf32>
      %c0_11 = arith.constant 0 : index
      %c0_12 = arith.constant 0 : index
      %13 = vector.load %arg7[%c0_11, %c0_12] : memref<8x32xf32, #tpu.memory_space<vmem>>, vector<8x32xf32>
      tpu.vector_store %arg7[%c0_11, %c0_12], %12 {strides = array<i32>} : memref<8x32xf32, #tpu.memory_space<vmem>>, vector<8x32xf32>,
    } else {
    }
    %c0 = arith.constant 0 : index
    %c0_1 = arith.constant 0 : index
    %3 = vector.load %arg7[%c0, %c0_1] : memref<8x32xf32, #tpu.memory_space<vmem>>, vector<8x32xf32>
    %c0_2 = arith.constant 0 : index
    %c0_3 = arith.constant 0 : index
    %4 = vector.load %arg3[%c0_2, %c0_3] : memref<8x32xf32, #tpu.memory_space<vmem>>, vector<8x32xf32>
    %c0_4 = arith.constant 0 : index
    %c0_5 = arith.constant 0 : index
    %5 = vector.load %arg4[%c0_4, %c0_5] : memref<32x32xf32, #tpu.memory_space<vmem>>, vector<32x32xf32>
    %cst = arith.constant dense<0.000000e+00> : vector<8x32xf32>
    %6 = tpu.matmul %4, %5, %cst {dimension_numbers = #tpu.dot_dimension_numbers<[1], [0], [0], [1], [0, 0, 1, 1], [], []>} : vector<8x32xf32>, vector<32x32xf32>, vector<8x32xf32> -> vector<8x32xf32>
    %7 = arith.addf %3, %6 : vector<8x32xf32>
    %c0_6 = arith.constant 0 : index
    %c0_7 = arith.constant 0 : index
    %8 = vector.load %arg7[%c0_6, %c0_7] : memref<8x32xf32, #tpu.memory_space<vmem>>, vector<8x32xf32>
    tpu.vector_store %arg7[%c0_6, %c0_7], %7 {strides = array<i32>} : memref<8x32xf32, #tpu.memory_space<vmem>>, vector<8x32xf32>,
    %c0_i32_8 = arith.constant 0 : i32
    %9 = arith.cmpi eq, %arg2, %c0_i32_8 : i32
    %10 = arith.extui %9 : i1 to i32
    %c0_i32_9 = arith.constant 0 : i32
    %11 = arith.cmpi ne, %10, %c0_i32_9 : i32
    scf.if %11 {
      %c0_10 = arith.constant 0 : index
      %c0_11 = arith.constant 0 : index
      %12 = vector.load %arg7[%c0_10, %c0_11] : memref<8x32xf32, #tpu.memory_space<vmem>>, vector<8x32xf32>
      %c0_12 = arith.constant 0 : index
      %c0_13 = arith.constant 0 : index
      %13 = vector.load %arg5[%c0_12, %c0_13] : memref<1x32xf32, #tpu.memory_space<vmem>>, vector<1x32xf32>
      %14 = vector.broadcast %13 : vector<1x32xf32> to vector<8x32xf32>
      %15 = arith.addf %12, %14 : vector<8x32xf32>
      %c0_14 = arith.constant 0 : index
      %c0_15 = arith.constant 0 : index
      %16 = vector.load %arg6[%c0_14, %c0_15] : memref<8x32xf32, #tpu.memory_space<vmem>>, vector<8x32xf32>
      tpu.vector_store %arg6[%c0_14, %c0_15], %15 {strides = array<i32>} : memref<8x32xf32, #tpu.memory_space<vmem>>, vector<8x32xf32>,
    } else {
    }
    return
  }
  func.func @transform_0(%arg0: i32, %arg1: i32, %arg2: i32) -> (i32, i32) {
    %c0_i32 = arith.constant 0 : i32
    return %arg0, %arg2 : i32, i32
  }
  func.func @transform_1(%arg0: i32, %arg1: i32, %arg2: i32) -> (i32, i32) {
    %c0_i32 = arith.constant 0 : i32
    return %arg2, %arg1 : i32, i32
  }
  func.func @transform_2(%arg0: i32, %arg1: i32, %arg2: i32) -> (i32, i32) {
    %c0_i32 = arith.constant 0 : i32
    %c0_i32_0 = arith.constant 0 : i32
    return %c0_i32, %arg1 : i32, i32
  }
  func.func @transform_3(%arg0: i32, %arg1: i32, %arg2: i32) -> (i32, i32) {
    %c0_i32 = arith.constant 0 : i32
    return %arg0, %arg1 : i32, i32
  }
}

</mosaic_0001>

<llo_original>
// kernel: linear_pallas.1
$region0: #{linear_pallas.1}
  #allocation0 [shape = 'u32[]', space=smem, size = 0x4, offset = 0x4, fixed_abs, tag = 'smem constant byte address 0x4 - core index']
  #allocation1 [shape = 'u32[144,128]{1,0:T(1,128)}', space=vmem, size = 0x12000, scoped, tag = 'internal scratch']
  #allocation2 [shape = 'f32[8,32]{1,0:T(8,128)}', space=vmem, size = 0x1000, scoped, tag = 'scratch operand']
  %s0 = inlined_call_operand.hbm [shape: f32[8,32], index: 0, kind: input, shape index: {}]
  %s1 = inlined_call_operand.hbm [shape: f32[32,32], index: 1, kind: input, shape index: {}]
  %s2 = inlined_call_operand.vmem [shape: f32[1,32], index: 2, kind: input, shape index: {}]
  %s3 = inlined_call_operand.hbm [shape: f32[8,32], index: 3, kind: output, shape index: {}]
  %s4 = sld [smem:[#allocation0]]
  $region38: #{linear_pallas.1} parent=0
    _
  %s6 = ssub.s32 1, %s4
  %s7 = scalar_select 0, %s6, %s4
  $region1: #{linear_pallas.1} parent=0
    #allocation3 [shape = 'u8[4096]{0}', space=vmem, size = 0x1000, scoped, tag = 'input window, operand 0, single buffered']
    #allocation4 [shape = 's32[1]{0}', space=sflag, size = 0x4, scoped, tag = 'scoped memory for linear_pallas.1']
    #allocation5 [shape = 's32[1]{0}', space=sflag, size = 0x4, scoped, tag = 'scoped memory for linear_pallas.1']
    #allocation6 [shape = 'u8[16384]{0}', space=vmem, size = 0x4000, scoped, tag = 'input window, operand 1, single buffered']
    #allocation7 [shape = 's32[1]{0}', space=sflag, size = 0x4, scoped, tag = 'scoped memory for linear_pallas.1']
    #allocation8 [shape = 'u8[4096]{0}', space=vmem, size = 0x1000, scoped, tag = 'output window, operand 0, single buffered']
    %8 = vsyncpa [#allocation4], 0
    %9 = vsyncpa [#allocation7], 0
    %10 = vsyncpa [#allocation5], 0
    // Predicated region
    $region2: #{linear_pallas.1} parent=1 // pred_check
      _
    $region3: #{linear_pallas.1} parent=1 // pred_check_branch
      %12 = sbr.rel (0) target = $region5
    $region4: #{linear_pallas.1} parent=1 // pred_region
      %s14 = ssub.s32 128, 128
      %15 = vsyncadd [#allocation4], %s14
      %s17 = sshll.u32 [#allocation3], 4
      %s18 = int_to_ptr.vmem [resolvable:$true] %s17
      %20 = dma.hbm_to_vmem [thread:$0]  %s0, 128, %s18, [#allocation4]
    $region5: #{linear_pallas.1} parent=1 // pred_fallthru
      _
    // Predicated region
    $region6: #{linear_pallas.1} parent=1 // pred_check
      _
    $region7: #{linear_pallas.1} parent=1 // pred_check_branch
      %22 = sbr.rel (0) target = $region9
    $region8: #{linear_pallas.1} parent=1 // pred_region
      %s24 = ssub.s32 512, 512
      %25 = vsyncadd [#allocation7], %s24
      %s26 = sshll.u32 [#allocation6], 4
      %s27 = int_to_ptr.vmem [resolvable:$true] %s26
      %32 = dma.hbm_to_vmem [thread:$0]  %s1, 512, %s27, [#allocation7], 128, 128, 8
    $region9: #{linear_pallas.1} parent=1 // pred_fallthru
      _
    // Predicated region
    $region10: #{linear_pallas.1} parent=1 // pred_check
      _
    $region11: #{linear_pallas.1} parent=1 // pred_check_branch
      %34 = sbr.rel (0) target = $region13
    $region12: #{linear_pallas.1} parent=1 // pred_region
      _
    $region13: #{linear_pallas.1} parent=1 // pred_fallthru
      _
    // Predicated region
    $region14: #{linear_pallas.1} parent=1 // pred_check
      _
    $region15: #{linear_pallas.1} parent=1 // pred_check_branch
      %36 = sbr.rel (0) target = $region17
    $region16: #{linear_pallas.1} parent=1 // pred_region
      %37 = dma.done [#allocation4], 128
    $region17: #{linear_pallas.1} parent=1 // pred_fallthru
      _
    // Predicated region
    $region18: #{linear_pallas.1} parent=1 // pred_check
      _
    $region19: #{linear_pallas.1} parent=1 // pred_check_branch
      %39 = sbr.rel (0) target = $region21
    $region20: #{linear_pallas.1} parent=1 // pred_region
      %40 = dma.done [#allocation7], 512
    $region21: #{linear_pallas.1} parent=1 // pred_fallthru
      _
    %p41 = scmp.eq.s32.totalorder 0, 0
    // Predicated region
    $region22: #{linear_pallas.1} parent=1 // pred_check
      %p42 = pneg %p41
    $region23: #{linear_pallas.1} parent=1 // pred_check_branch
      %44 = sbr.rel (%p42) target = $region25
    $region24: #{linear_pallas.1} parent=1 // pred_region
      %vm45 = vcmask 261120
      %46 = vst.msk [vmem:[#allocation2] sm:$0xff] %vm45, 0.0
    $region25: #{linear_pallas.1} parent=1 // pred_fallthru
      _
    %v47 = vld [vmem:[#allocation2] sm:$0xff]
    %v48 = vld [vmem:[#allocation3] sm:$0xff]
    %v49 = vld [vmem:[#allocation6] sm:$0xff]
    %v50 = vld [vmem:[#allocation6 + $0x8] sm:$0xff]
    %v51 = vld [vmem:[#allocation6 + $0x10] sm:$0xff]
    %v52 = vld [vmem:[#allocation6 + $0x18] sm:$0xff]
    %vm53 = vcmask 261120
    %v55 = vsel %vm53, %v48, 0
    %57 = vmatprep.subr.mxu0 0.0
    %58 = vmatpush1.msra.mxu0 %v49
    %59 = vmatprep.subr.mxu0 0.0
    %60 = vmatpush1.msra.mxu0 %v50
    %61 = vmatprep.subr.mxu0 0.0
    %62 = vmatpush1.msra.mxu0 %v51
    %63 = vmatprep.subr.mxu0 0.0
    %64 = vmatpush1.msra.mxu0 %v52
    %65 = vmatprep.subr.mxu0 0.0
    %66 = vmatpush1.msra.mxu0 0.0
    %67 = vmatprep.subr.mxu0 0.0
    %68 = vmatpush1.msra.mxu0 0.0
    %69 = vmatprep.subr.mxu0 0.0
    %70 = vmatpush1.msra.mxu0 0.0
    %71 = vmatprep.subr.mxu0 0.0
    %72 = vmatpush1.msra.mxu0 0.0
    %73 = vmatprep.subr.mxu0 0.0
    %74 = vmatpush1.msra.mxu0 0.0
    %75 = vmatprep.subr.mxu0 0.0
    %76 = vmatpush1.msra.mxu0 0.0
    %77 = vmatprep.subr.mxu0 0.0
    %78 = vmatpush1.msra.mxu0 0.0
    %79 = vmatprep.subr.mxu0 0.0
    %80 = vmatpush1.msra.mxu0 0.0
    %81 = vmatprep.subr.mxu0 0.0
    %82 = vmatpush1.msra.mxu0 0.0
    %83 = vmatprep.subr.mxu0 0.0
    %84 = vmatpush1.msra.mxu0 0.0
    %85 = vmatprep.subr.mxu0 0.0
    %86 = vmatpush1.msra.mxu0 0.0
    %87 = vmatprep.subr.mxu0 0.0
    %88 = vmatpush1.msra.mxu0 0.0
    %89 = vmatprep.subr.mxu0 0.0
    %90 = vmatpush1.msra.mxu0 0.0
    %91 = vmatprep.subr.mxu0 0.0
    %92 = vmatpush1.msra.mxu0 0.0
    %93 = vmatprep.subr.mxu0 0.0
    %94 = vmatpush1.msra.mxu0 0.0
    %95 = vmatprep.subr.mxu0 0.0
    %96 = vmatpush1.msra.mxu0 0.0
    %97 = vmatprep.subr.mxu0 0.0
    %98 = vmatpush1.msra.mxu0 0.0
    %99 = vmatprep.subr.mxu0 0.0
    %100 = vmatpush1.msra.mxu0 0.0
    %101 = vmatprep.subr.mxu0 0.0
    %102 = vmatpush1.msra.mxu0 0.0
    %103 = vmatprep.subr.mxu0 0.0
    %104 = vmatpush1.msra.mxu0 0.0
    %105 = vmatprep.subr.mxu0 0.0
    %106 = vmatpush1.msra.mxu0 0.0
    %107 = vmatprep.subr.mxu0 0.0
    %108 = vmatpush1.msra.mxu0 0.0
    %109 = vmatprep.subr.mxu0 0.0
    %110 = vmatpush1.msra.mxu0 0.0
    %111 = vmatprep.subr.mxu0 0.0
    %112 = vmatpush1.msra.mxu0 0.0
    %113 = vmatprep.subr.mxu0 0.0
    %114 = vmatpush1.msra.mxu0 0.0
    %115 = vmatprep.subr.mxu0 0.0
    %116 = vmatpush1.msra.mxu0 0.0
    %117 = vmatprep.subr.mxu0 0.0
    %118 = vmatpush1.msra.mxu0 0.0
    %119 = vmatprep.subr.mxu0 0.0
    %120 = vmatpush1.msra.mxu0 0.0
    %121 = vmatprep.mubr.f32.mxu0 0.0
    %122 = vmatmul.mubr.f32.gmra.mrb[0].mxu0 %v55
    %v123 = vpop.f32.mrb[0].mxu0
    %v124 = vadd.f32 0.0, %v123
    %v125 = vpop.f32.mrb[0].mxu0
    %126 = vdwg.mxu0
    %v127 = vadd.f32 %v47, %v124
    %128 = vst.msk [vmem:[#allocation2] sm:$0xff] %vm53, %v127
    // Predicated region
    $region26: #{linear_pallas.1} parent=1 // pred_check
      %p129 = pneg %p41
    $region27: #{linear_pallas.1} parent=1 // pred_check_branch
      %131 = sbr.rel (%p129) target = $region29
    $region28: #{linear_pallas.1} parent=1 // pred_region
      %v132 = vld [vmem:[#allocation2] sm:$0xff]
      %v133 = vld [vmem:[%s2] sm:$0x1]
      %v135 = vlaneseq
      %v136 = vshrl.u32 %v135, 7
      %v137 = vsub.s32 0, %v136
      %v138 = vrot.slane %v133, %v137
      %v140 = vadd.f32 %v132, %v138
      %141 = vst.msk [vmem:[#allocation8] sm:$0xff] %vm53, %v140
    $region29: #{linear_pallas.1} parent=1 // pred_fallthru
      _
    // Predicated region
    $region30: #{linear_pallas.1} parent=1 // pred_check
      _
    $region31: #{linear_pallas.1} parent=1 // pred_check_branch
      %143 = sbr.rel (0) target = $region33
    $region32: #{linear_pallas.1} parent=1 // pred_region
      %s145 = ssub.s32 128, 128
      %146 = vsyncadd [#allocation5], %s145
      %s148 = sshll.u32 [#allocation8], 4
      %s149 = int_to_ptr.vmem [resolvable:$true] %s148
      %151 = dma.vmem_to_hbm [thread:$0]  %s149, 128, %s3, [#allocation5]
    $region33: #{linear_pallas.1} parent=1 // pred_fallthru
      _
    // Predicated region
    $region34: #{linear_pallas.1} parent=1 // pred_check
      _
    $region35: #{linear_pallas.1} parent=1 // pred_check_branch
      %153 = sbr.rel (0) target = $region37
    $region36: #{linear_pallas.1} parent=1 // pred_region
      %154 = dma.done [#allocation5], 128
    $region37: #{linear_pallas.1} parent=1 // pred_fallthru
      _
    %155 = vsyncpa [#allocation4], 1
    %156 = vsyncpa [#allocation7], 1
    %157 = vsyncpa [#allocation5], 1

</llo_original>
